<compile_context>
chip_gen: v6e
topology: v6e:2x2x1
jax: 0.10.0
libtpu: 0.0.40
codegen_flags: <defaults>
</compile_context>

<pallas_src>
import functools

import jax
import jax.numpy as jnp
from jax import lax
from jax.experimental import pallas as pl
from jax.experimental.pallas import tpu as pltpu


def _round_up(x: int, m: int) -> int:
    return ((x + m - 1) // m) * m


def _cdiv(a: int, b: int) -> int:
    return (a + b - 1) // b


def _sublane(dtype) -> int:
    # Minimal second-minor multiple for clean TPU tiling per dtype width.
    return {4: 8, 2: 16, 1: 32}.get(jnp.dtype(dtype).itemsize, 8)


_VMEM_BUDGET = 24 * 1024 * 1024   # target working-set (tiles + buffers)
_VMEM_LIMIT = 32 * 1024 * 1024    # scoped VMEM limit; safe on v5e/v6e/v7x


def _lora_kernel(*refs, alpha, k_rem, fuse_base):
    """One (i, k) grid step of  alpha * (x @ W_a) @ W_b  [+ base].

    refs (fuse_base=False): x(tm,tk), W_a(tk,R), W_b(R,Np), o(tm,Np), xa(tm,R)
    refs (fuse_base=True) : x, W_a, W_b, base(tm,Np), o, xa
    The output block is constant across k -> it stays VMEM-resident and is
    written only in the k==last epilogue.
    """
    if fuse_base:
        x_ref, wa_ref, wb_ref, base_ref, o_ref, xa_ref = refs
    else:
        x_ref, wa_ref, wb_ref, o_ref, xa_ref = refs
        base_ref = None

    k = pl.program_id(1)
    nk = pl.num_programs(1)

    @pl.when(k == 0)
    def _init():
        xa_ref[...] = jnp.zeros_like(xa_ref)

    if k_rem == 0:
        # K is tile-aligned: no masking anywhere in the hot loop.
        xa_ref[...] += jnp.dot(x_ref[...], wa_ref[...],
                               preferred_element_type=jnp.float32)
    else:
        # Unaligned K: mask only the last K block (W_a's K tail is zero-padded
        # in the wrapper, so the masked columns contribute exactly 0).
        @pl.when(k < nk - 1)
        def _full_block():
            xa_ref[...] += jnp.dot(x_ref[...], wa_ref[...],
                                   preferred_element_type=jnp.float32)

        @pl.when(k == nk - 1)
        def _tail_block():
            col = lax.broadcasted_iota(jnp.int32, x_ref.shape, 1)
            x_t = jnp.where(col < k_rem, x_ref[...], 0).astype(x_ref.dtype)
            xa_ref[...] += jnp.dot(x_t, wa_ref[...],
                                   preferred_element_type=jnp.float32)

    @pl.when(k == nk - 1)
    def _finish():
        # Fold alpha into the tiny (R, Np) W_b tile (cheap VPU work) instead
        # of scaling the big (tm, Np) output tile.
        wb = alpha * wb_ref[...].astype(jnp.float32)
        out = jnp.dot(xa_ref[...], wb, preferred_element_type=jnp.float32)
        if fuse_base:
            out = out + base_ref[...].astype(jnp.float32)
        o_ref[...] = out.astype(o_ref.dtype)


def lora_forward(x, w_a, w_b, alpha, base=None, *, tm=512, tk=1024):
    """alpha * (x @ w_a @ w_b) [+ base], tiled Pallas TPU kernel.

    x:    (M, K) activations           w_a: (K, R)   w_b: (R, N)
    base: optional (M, N) frozen base-projection output; when its shape/dtype
          allow it, it is fused via input_output_aliases (in-kernel add).

    Grid is (M tiles, K tiles); the output block carries the full padded N so
    x is streamed exactly once.  Only W_a / W_b (tiny) are padded; x is never
    copied in HBM by the wrapper.
    """
    M, K = x.shape
    Kw, R = w_a.shape
    Rw, N = w_b.shape
    assert K == Kw and R == Rw, (x.shape, w_a.shape, w_b.shape)

    out_dtype = x.dtype
    Np = _round_up(N, 128)            # lane-dense, unmasked output stores

    fuse_base = (base is not None and base.shape == (M, N)
                 and Np == N and base.dtype == out_dtype)

    sub = _sublane(x.dtype)
    tm = min(tm, _round_up(M, sub))
    tk = min(tk, _round_up(K, 128))

    # v7x has 2 TCs per chip: give the parallel M axis >= 2 blocks if possible.
    if _cdiv(M, tm) < 2 and M > sub:
        tm = max(sub, _round_up(_cdiv(M, 2), sub))

    x_b = jnp.dtype(x.dtype).itemsize
    wa_b = jnp.dtype(w_a.dtype).itemsize
    wb_b = jnp.dtype(w_b.dtype).itemsize
    o_b = jnp.dtype(out_dtype).itemsize

    def footprint(tm_, tk_):
        b = 2 * tm_ * tk_ * x_b                       # x tile (double buffer)
        b += 2 * tk_ * R * wa_b                       # W_a tile
        b += 2 * R * Np * wb_b                        # W_b (resident)
        b += (4 if fuse_base else 2) * tm_ * Np * o_b  # output (+ aliased base)
        b += tm_ * R * 4                              # fp32 xa scratch
        return b

    # Shrink tiles until the working set fits every generation's scoped VMEM.
    while footprint(tm, tk) > _VMEM_BUDGET and tm > sub:
        tm = max(sub, _round_up(tm // 2, sub))
    while footprint(tm, tk) > _VMEM_BUDGET and tk > 128:
        tk = max(128, _round_up(tk // 2, 128))
    # TODO(synk): for pathologically large out_dim (> ~300K) re-introduce an
    # N grid axis instead of shrinking tm further.

    nk = _cdiv(K, tk)
    k_rem = K % tk                    # 0 => no in-kernel masking needed
    Kp = nk * tk

    # Only the tiny LoRA factors are padded (x / output are never copied):
    #   * W_a K-tail rows -> zeros, so masked x tail contributes exactly 0
    #   * W_b N -> multiple of 128 for lane-dense stores
    if Kp != K:
        w_a = jnp.pad(w_a, ((0, Kp - K), (0, 0)))
    if Np != N:
        w_b = jnp.pad(w_b, ((0, 0), (0, Np - N)))

    grid = (_cdiv(M, tm), nk)

    # alpha is a fixed module hyperparameter -> baked in as a constant.
    # (Pass it as an SMEM scalar instead if it ever varies at runtime.)
    kernel = functools.partial(_lora_kernel, alpha=float(alpha),
                               k_rem=k_rem, fuse_base=fuse_base)

    in_specs = [
        pl.BlockSpec((tm, tk), lambda i, k: (i, k)),   # x      (streamed once)
        pl.BlockSpec((tk, R), lambda i, k: (k, 0)),    # W_a    (tiny)
        pl.BlockSpec((R, Np), lambda i, k: (0, 0)),    # W_b    (VMEM-resident)
    ]
    operands = [x, w_a, w_b]
    io_aliases = {}
    if fuse_base:
        in_specs.append(pl.BlockSpec((tm, Np), lambda i, k: (i, 0)))  # base
        operands.append(base)
        io_aliases = {3: 0}   # base aliases the output -> fused in-kernel add

    out = pl.pallas_call(
        kernel,
        out_shape=jax.ShapeDtypeStruct((M, Np), out_dtype),
        grid_spec=pltpu.PrefetchScalarGridSpec(
            num_scalar_prefetch=0,
            grid=grid,
            in_specs=in_specs,
            out_specs=pl.BlockSpec((tm, Np), lambda i, k: (i, 0)),
            scratch_shapes=[pltpu.VMEM((tm, R), jnp.float32)],
        ),
        compiler_params=pltpu.CompilerParams(
            # K is the reduction axis (output block constant across it);
            # M tiles are independent -> megacore / 2nd TC can pick them up.
            dimension_semantics=("parallel", "arbitrary"),
            vmem_limit_bytes=_VMEM_LIMIT,
        ),
        input_output_aliases=io_aliases,
    )(*operands)

    if Np != N:
        out = out[:, :N]
    if base is not None and not fuse_base:
        out = out + base.astype(out_dtype)   # fallback: unfused add
    return out


if __name__ == "__main__":
    key = jax.random.PRNGKey(0)
    k1, k2, k3, k4, k5, k6, k7, k8 = jax.random.split(key, 8)

    rank, alpha = 4, 2.0

    # ---- Case 1: faithful LoRALayer init (W_b = 0), module-default shapes ----
    in_dim, out_dim, batch = 32, 32, 8
    std_dev = 1.0 / jnp.sqrt(jnp.float32(rank))
    w_a = jax.random.normal(k1, (in_dim, rank), dtype=jnp.float32) * std_dev
    w_b = jnp.zeros((rank, out_dim), dtype=jnp.float32)
    x = jax.random.normal(k2, (batch, in_dim), dtype=jnp.float32)

    out1 = jax.block_until_ready(lora_forward(x, w_a, w_b, alpha))
    ref1 = alpha * (x @ w_a @ w_b)
    assert out1.shape == ref1.shape
    assert jnp.allclose(out1, ref1, atol=1e-5, rtol=1e-5)

    # ---- Case 2: unaligned M/K/N, multi-block (3, 2) grid, in-kernel K-tail
    # masking and masked M-tail stores.  Integer-valued inputs keep the MXU
    # results exact so the comparison against the XLA reference stays tight.
    b2, i2, o2 = 20, 160, 192
    x2 = jnp.round(jax.random.normal(k3, (b2, i2))).astype(jnp.float32)
    wa2 = jnp.round(jax.random.normal(k4, (i2, rank))).astype(jnp.float32)
    wb2 = jnp.round(jax.random.normal(k5, (rank, o2))).astype(jnp.float32)

    out2 = jax.block_until_ready(lora_forward(x2, wa2, wb2, alpha, tm=8, tk=128))
    ref2 = alpha * (x2 @ wa2 @ wb2)
    assert out2.shape == ref2.shape
    assert jnp.allclose(out2, ref2, atol=1e-5, rtol=1e-5)

    # ---- Case 3: bf16 activations/weights + fused frozen-base add via
    # input_output_aliases (delta added in-kernel, no extra HBM round trip).
    b3, i3, o3 = 16, 64, 128
    x3 = jnp.round(jax.random.normal(k6, (b3, i3))).astype(jnp.bfloat16)
    wa3 = jnp.round(jax.random.normal(k7, (i3, rank))).astype(jnp.bfloat16)
    wb3 = jnp.sign(jax.random.normal(k8, (rank, o3))).astype(jnp.bfloat16)
    base3 = jnp.round(jax.random.normal(k2, (b3, o3))).astype(jnp.bfloat16)

    ref3 = (alpha * (x3.astype(jnp.float32) @ wa3.astype(jnp.float32)
                     @ wb3.astype(jnp.float32))
            + base3.astype(jnp.float32))
    out3 = jax.block_until_ready(lora_forward(x3, wa3, wb3, alpha, base=base3))
    assert out3.shape == ref3.shape and out3.dtype == jnp.bfloat16
    assert jnp.allclose(out3.astype(jnp.float32), ref3, atol=5e-2, rtol=5e-2)

    print("KERNEL_OK")
</pallas_src>

<mosaic_0001>
module attributes {stable_mosaic.version = 11 : i64} {
  func.func @_lora_kernel(%arg0: i32, %arg1: i32, %arg2: memref<8x128xf32, #tpu.memory_space<vmem>>, %arg3: memref<128x4xf32, #tpu.memory_space<vmem>>, %arg4: memref<4x128xf32, #tpu.memory_space<vmem>>, %arg5: memref<8x128xf32, #tpu.memory_space<vmem>>, %arg6: memref<8x4xf32, #tpu.memory_space<vmem>>) attributes {dimension_semantics = [#tpu.dimension_semantics<parallel>, #tpu.dimension_semantics<arbitrary>], iteration_bounds = array<i64: 1, 1>, scalar_prefetch = 0 : i64, scratch_operands = 1 : i64, tpu.core_type = #tpu.core_type<tc>, window_params = [{transform_indices = @transform_0, window_bounds = array<i64: 8, 128>}, {transform_indices = @transform_1, window_bounds = array<i64: 128, 4>}, {pipeline_mode = #tpu.pipeline_mode<synchronous>, transform_indices = @transform_2, window_bounds = array<i64: 4, 128>}, {transform_indices = @transform_3, window_bounds = array<i64: 8, 128>}]} {
    %c0_i32 = arith.constant 0 : i32
    %0 = arith.cmpi eq, %arg1, %c0_i32 : i32
    %1 = arith.extui %0 : i1 to i32
    %c0_i32_0 = arith.constant 0 : i32
    %2 = arith.cmpi ne, %1, %c0_i32_0 : i32
    scf.if %2 {
      %cst = arith.constant 0.000000e+00 : f32
      %12 = vector.broadcast %cst : f32 to vector<8x4xf32>
      %c0 = arith.constant 0 : index
      %c0_7 = arith.constant 0 : index
      %13 = vector.load %arg6[%c0, %c0_7] : memref<8x4xf32, #tpu.memory_space<vmem>>, vector<8x4xf32>
      tpu.vector_store %arg6[%c0, %c0_7], %12 {strides = array<i32>} : memref<8x4xf32, #tpu.memory_space<vmem>>, vector<8x4xf32>,
    } else {
    }
    %c0_i32_1 = arith.constant 0 : i32
    %3 = arith.cmpi slt, %arg1, %c0_i32_1 : i32
    %4 = arith.extui %3 : i1 to i32
    %c0_i32_2 = arith.constant 0 : i32
    %5 = arith.cmpi ne, %4, %c0_i32_2 : i32
    scf.if %5 {
      %c0 = arith.constant 0 : index
      %c0_7 = arith.constant 0 : index
      %12 = vector.load %arg6[%c0, %c0_7] : memref<8x4xf32, #tpu.memory_space<vmem>>, vector<8x4xf32>
      %c0_8 = arith.constant 0 : index
      %c0_9 = arith.constant 0 : index
      %13 = vector.load %arg2[%c0_8, %c0_9] : memref<8x128xf32, #tpu.memory_space<vmem>>, vector<8x128xf32>
      %c0_10 = arith.constant 0 : index
      %c0_11 = arith.constant 0 : index
      %14 = vector.load %arg3[%c0_10, %c0_11] : memref<128x4xf32, #tpu.memory_space<vmem>>, vector<128x4xf32>
      %cst = arith.constant dense<0.000000e+00> : vector<8x4xf32>
      %15 = tpu.matmul %13, %14, %cst {dimension_numbers = #tpu.dot_dimension_numbers<[1], [0], [0], [1], [0, 0, 1, 1], [], []>} : vector<8x128xf32>, vector<128x4xf32>, vector<8x4xf32> -> vector<8x4xf32>
      %16 = arith.addf %12, %15 : vector<8x4xf32>
      %c0_12 = arith.constant 0 : index
      %c0_13 = arith.constant 0 : index
      %17 = vector.load %arg6[%c0_12, %c0_13] : memref<8x4xf32, #tpu.memory_space<vmem>>, vector<8x4xf32>
      tpu.vector_store %arg6[%c0_12, %c0_13], %16 {strides = array<i32>} : memref<8x4xf32, #tpu.memory_space<vmem>>, vector<8x4xf32>,
    } else {
    }
    %c0_i32_3 = arith.constant 0 : i32
    %6 = arith.cmpi eq, %arg1, %c0_i32_3 : i32
    %7 = arith.extui %6 : i1 to i32
    %c0_i32_4 = arith.constant 0 : i32
    %8 = arith.cmpi ne, %7, %c0_i32_4 : i32
    scf.if %8 {
      %12 = tpu.iota {dimensions = array<i32: 1>} : vector<8x128xi32>
      %c32_i32 = arith.constant 32 : i32
      %13 = vector.broadcast %c32_i32 : i32 to vector<8x128xi32>
      %14 = arith.cmpi slt, %12, %13 : vector<8x128xi32>
      %c0 = arith.constant 0 : index
      %c0_7 = arith.constant 0 : index
      %15 = vector.load %arg2[%c0, %c0_7] : memref<8x128xf32, #tpu.memory_space<vmem>>, vector<8x128xf32>
      %c0_i32_8 = arith.constant 0 : i32
      %16 = arith.sitofp %c0_i32_8 : i32 to f32
      %17 = vector.broadcast %16 : f32 to vector<8x128xf32>
      %18 = arith.select %14, %15, %17 : vector<8x128xi1>, vector<8x128xf32>
      %c0_9 = arith.constant 0 : index
      %c0_10 = arith.constant 0 : index
      %19 = vector.load %arg6[%c0_9, %c0_10] : memref<8x4xf32, #tpu.memory_space<vmem>>, vector<8x4xf32>
      %c0_11 = arith.constant 0 : index
      %c0_12 = arith.constant 0 : index
      %20 = vector.load %arg3[%c0_11, %c0_12] : memref<128x4xf32, #tpu.memory_space<vmem>>, vector<128x4xf32>
      %cst = arith.constant dense<0.000000e+00> : vector<8x4xf32>
      %21 = tpu.matmul %18, %20, %cst {dimension_numbers = #tpu.dot_dimension_numbers<[1], [0], [0], [1], [0, 0, 1, 1], [], []>} : vector<8x128xf32>, vector<128x4xf32>, vector<8x4xf32> -> vector<8x4xf32>
      %22 = arith.addf %19, %21 : vector<8x4xf32>
      %c0_13 = arith.constant 0 : index
      %c0_14 = arith.constant 0 : index
      %23 = vector.load %arg6[%c0_13, %c0_14] : memref<8x4xf32, #tpu.memory_space<vmem>>, vector<8x4xf32>
      tpu.vector_store %arg6[%c0_13, %c0_14], %22 {strides = array<i32>} : memref<8x4xf32, #tpu.memory_space<vmem>>, vector<8x4xf32>,
    } else {
    }
    %c0_i32_5 = arith.constant 0 : i32
    %9 = arith.cmpi eq, %arg1, %c0_i32_5 : i32
    %10 = arith.extui %9 : i1 to i32
    %c0_i32_6 = arith.constant 0 : i32
    %11 = arith.cmpi ne, %10, %c0_i32_6 : i32
    scf.if %11 {
      %c0 = arith.constant 0 : index
      %c0_7 = arith.constant 0 : index
      %12 = vector.load %arg4[%c0, %c0_7] : memref<4x128xf32, #tpu.memory_space<vmem>>, vector<4x128xf32>
      %cst = arith.constant 2.000000e+00 : f32
      %13 = vector.broadcast %cst : f32 to vector<4x128xf32>
      %14 = arith.mulf %13, %12 : vector<4x128xf32>
      %c0_8 = arith.constant 0 : index
      %c0_9 = arith.constant 0 : index
      %15 = vector.load %arg6[%c0_8, %c0_9] : memref<8x4xf32, #tpu.memory_space<vmem>>, vector<8x4xf32>
      %cst_10 = arith.constant dense<0.000000e+00> : vector<8x128xf32>
      %16 = tpu.matmul %15, %14, %cst_10 {dimension_numbers = #tpu.dot_dimension_numbers<[1], [0], [0], [1], [0, 0, 1, 1], [], []>} : vector<8x4xf32>, vector<4x128xf32>, vector<8x128xf32> -> vector<8x128xf32>
      %c0_11 = arith.constant 0 : index
      %c0_12 = arith.constant 0 : index
      %17 = vector.load %arg5[%c0_11, %c0_12] : memref<8x128xf32, #tpu.memory_space<vmem>>, vector<8x128xf32>
      tpu.vector_store %arg5[%c0_11, %c0_12], %16 {strides = array<i32>} : memref<8x128xf32, #tpu.memory_space<vmem>>, vector<8x128xf32>,
    } else {
    }
    return
  }
  func.func @transform_0(%arg0: i32, %arg1: i32) -> (i32, i32) {
    %c0_i32 = arith.constant 0 : i32
    return %arg0, %arg1 : i32, i32
  }
  func.func @transform_1(%arg0: i32, %arg1: i32) -> (i32, i32) {
    %c0_i32 = arith.constant 0 : i32
    %c0_i32_0 = arith.constant 0 : i32
    return %arg1, %c0_i32 : i32, i32
  }
  func.func @transform_2(%arg0: i32, %arg1: i32) -> (i32, i32) {
    %c0_i32 = arith.constant 0 : i32
    %c0_i32_0 = arith.constant 0 : i32
    %c0_i32_1 = arith.constant 0 : i32
    return %c0_i32, %c0_i32_0 : i32, i32
  }
  func.func @transform_3(%arg0: i32, %arg1: i32) -> (i32, i32) {
    %c0_i32 = arith.constant 0 : i32
    %c0_i32_0 = arith.constant 0 : i32
    return %arg0, %c0_i32 : i32, i32
  }
}

</mosaic_0001>

<llo_original>
// kernel: tpu_custom_call.1
$region0: #{tpu_custom_call.1}
  #allocation0 [shape = 'u32[]', space=smem, size = 0x4, offset = 0x4, fixed_abs, tag = 'smem constant byte address 0x4 - core index']
  #allocation1 [shape = 'u32[144,128]{1,0:T(1,128)}', space=vmem, size = 0x12000, scoped, tag = 'internal scratch']
  #allocation2 [shape = 'f32[8,4]{1,0:T(8,128)}', space=vmem, size = 0x1000, scoped, tag = 'scratch operand']
  %s0 = inlined_call_operand.vmem [shape: f32[8,32], index: 0, kind: input, shape index: {}]
  %s1 = inlined_call_operand.vmem [shape: f32[128,4], index: 1, kind: input, shape index: {}]
  %s2 = inlined_call_operand.vmem [shape: f32[4,128], index: 2, kind: input, shape index: {}]
  %s3 = inlined_call_operand.hbm [shape: f32[8,128], index: 3, kind: output, shape index: {}]
  %s4 = sld [smem:[#allocation0]]
  $region34: #{tpu_custom_call.1} parent=0
    _
  %s6 = ssub.s32 1, %s4
  %s7 = scalar_select 0, %s6, %s4
  $region1: #{tpu_custom_call.1} parent=0
    #allocation3 [shape = 'u8[4096]{0}', space=vmem, size = 0x1000, scoped, tag = 'output window, operand 0, single buffered']
    #allocation4 [shape = 's32[1]{0}', space=sflag, size = 0x4, scoped, tag = 'scoped memory for tpu_custom_call.1']
    %8 = vsyncpa [#allocation4], 0
    // Predicated region
    $region2: #{tpu_custom_call.1} parent=1 // pred_check
      _
    $region3: #{tpu_custom_call.1} parent=1 // pred_check_branch
      %10 = sbr.rel (0) target = $region5
    $region4: #{tpu_custom_call.1} parent=1 // pred_region
      _
    $region5: #{tpu_custom_call.1} parent=1 // pred_fallthru
      _
    // Predicated region
    $region6: #{tpu_custom_call.1} parent=1 // pred_check
      _
    $region7: #{tpu_custom_call.1} parent=1 // pred_check_branch
      %12 = sbr.rel (0) target = $region9
    $region8: #{tpu_custom_call.1} parent=1 // pred_region
      _
    $region9: #{tpu_custom_call.1} parent=1 // pred_fallthru
      _
    // Predicated region
    $region10: #{tpu_custom_call.1} parent=1 // pred_check
      _
    $region11: #{tpu_custom_call.1} parent=1 // pred_check_branch
      %14 = sbr.rel (0) target = $region13
    $region12: #{tpu_custom_call.1} parent=1 // pred_region
      _
    $region13: #{tpu_custom_call.1} parent=1 // pred_fallthru
      _
    %p15 = scmp.eq.s32.totalorder 0, 0
    // Predicated region
    $region14: #{tpu_custom_call.1} parent=1 // pred_check
      %p16 = pneg %p15
    $region15: #{tpu_custom_call.1} parent=1 // pred_check_branch
      %18 = sbr.rel (%p16) target = $region17
    $region16: #{tpu_custom_call.1} parent=1 // pred_region
      %vm19 = vcmask 31744
      %20 = vst.msk [vmem:[#allocation2] sm:$0xff] %vm19, 0.0
    $region17: #{tpu_custom_call.1} parent=1 // pred_fallthru
      _
    %p21 = scmp.lt.s32.totalorder 0, 0
    // Predicated region
    $region18: #{tpu_custom_call.1} parent=1 // pred_check
      %p22 = pneg %p21
    $region19: #{tpu_custom_call.1} parent=1 // pred_check_branch
      %24 = sbr.rel (%p22) target = $region21
    $region20: #{tpu_custom_call.1} parent=1 // pred_region
      %v25 = vld [vmem:[#allocation2] sm:$0xff]
      %v26 = vld [vmem:[%s0] sm:$0xff]
      %v27 = vld [vmem:[%s1] sm:$0xff]
      %v28 = vld [vmem:[%s1 + $0x8] sm:$0xff]
      %v29 = vld [vmem:[%s1 + $0x10] sm:$0xff]
      %v30 = vld [vmem:[%s1 + $0x18] sm:$0xff]
      %v31 = vld [vmem:[%s1 + $0x20] sm:$0xff]
      %v32 = vld [vmem:[%s1 + $0x28] sm:$0xff]
      %v33 = vld [vmem:[%s1 + $0x30] sm:$0xff]
      %v34 = vld [vmem:[%s1 + $0x38] sm:$0xff]
      %v35 = vld [vmem:[%s1 + $0x40] sm:$0xff]
      %v36 = vld [vmem:[%s1 + $0x48] sm:$0xff]
      %v37 = vld [vmem:[%s1 + $0x50] sm:$0xff]
      %v38 = vld [vmem:[%s1 + $0x58] sm:$0xff]
      %v39 = vld [vmem:[%s1 + $0x60] sm:$0xff]
      %v40 = vld [vmem:[%s1 + $0x68] sm:$0xff]
      %v41 = vld [vmem:[%s1 + $0x70] sm:$0xff]
      %v42 = vld [vmem:[%s1 + $0x78] sm:$0xff]
      %43 = vmatprep.subr.mxu0 0.0
      %44 = vmatpush1.msra.mxu0 %v42
      %45 = vmatprep.subr.mxu0 0.0
      %46 = vmatpush1.msra.mxu0 %v41
      %47 = vmatprep.subr.mxu0 0.0
      %48 = vmatpush1.msra.mxu0 %v40
      %49 = vmatprep.subr.mxu0 0.0
      %50 = vmatpush1.msra.mxu0 %v39
      %51 = vmatprep.subr.mxu0 0.0
      %52 = vmatpush1.msra.mxu0 %v38
      %53 = vmatprep.subr.mxu0 0.0
      %54 = vmatpush1.msra.mxu0 %v37
      %55 = vmatprep.subr.mxu0 0.0
      %56 = vmatpush1.msra.mxu0 %v36
      %57 = vmatprep.subr.mxu0 0.0
      %58 = vmatpush1.msra.mxu0 %v35
      %59 = vmatprep.subr.mxu0 0.0
      %60 = vmatpush1.msra.mxu0 %v34
      %61 = vmatprep.subr.mxu0 0.0
      %62 = vmatpush1.msra.mxu0 %v33
      %63 = vmatprep.subr.mxu0 0.0
      %64 = vmatpush1.msra.mxu0 %v32
      %65 = vmatprep.subr.mxu0 0.0
      %66 = vmatpush1.msra.mxu0 %v31
      %67 = vmatprep.subr.mxu0 0.0
      %68 = vmatpush1.msra.mxu0 %v30
      %69 = vmatprep.subr.mxu0 0.0
      %70 = vmatpush1.msra.mxu0 %v29
      %71 = vmatprep.subr.mxu0 0.0
      %72 = vmatpush1.msra.mxu0 %v28
      %73 = vmatprep.subr.mxu0 0.0
      %74 = vmatpush1.msra.mxu0 %v27
      %75 = vmatprep.subr.mxu0 0.0
      %76 = vmatpush2.msra.mxu0 0.0
      %77 = vmatprep.subr.mxu0 0.0
      %78 = vmatpush2.msra.mxu0 0.0
      %79 = vmatprep.subr.mxu0 0.0
      %80 = vmatpush2.msra.mxu0 0.0
      %81 = vmatprep.subr.mxu0 0.0
      %82 = vmatpush2.msra.mxu0 0.0
      %83 = vmatprep.subr.mxu0 0.0
      %84 = vmatpush2.msra.mxu0 0.0
      %85 = vmatprep.subr.mxu0 0.0
      %86 = vmatpush2.msra.mxu0 0.0
      %87 = vmatprep.subr.mxu0 0.0
      %88 = vmatpush2.msra.mxu0 0.0
      %89 = vmatprep.subr.mxu0 0.0
      %90 = vmatpush2.msra.mxu0 0.0
      %91 = vmatprep.subr.mxu0 0.0
      %92 = vmatpush2.msra.mxu0 0.0
      %93 = vmatprep.subr.mxu0 0.0
      %94 = vmatpush2.msra.mxu0 0.0
      %95 = vmatprep.subr.mxu0 0.0
      %96 = vmatpush2.msra.mxu0 0.0
      %97 = vmatprep.subr.mxu0 0.0
      %98 = vmatpush2.msra.mxu0 0.0
      %99 = vmatprep.subr.mxu0 0.0
      %100 = vmatpush2.msra.mxu0 0.0
      %101 = vmatprep.subr.mxu0 0.0
      %102 = vmatpush2.msra.mxu0 0.0
      %103 = vmatprep.subr.mxu0 0.0
      %104 = vmatpush2.msra.mxu0 0.0
      %105 = vmatprep.subr.mxu0 0.0
      %106 = vmatpush2.msra.mxu0 0.0
      %107 = vmatprep.mubr.f32.mxu0 0.0
      %108 = vmatmul.mubr.f32.gmra.mxu0 %v26
      %v109 = vpop.f32.mrf.mxu0
      %v110 = vadd.f32 0.0, %v109
      %v111 = vpop.f32.mrf.mxu0
      %112 = vdwg.mxu0
      %v113 = vadd.f32 %v25, %v110
      %vm114 = vcmask 31744
      %115 = vst.msk [vmem:[#allocation2] sm:$0xff] %vm114, %v113
    $region21: #{tpu_custom_call.1} parent=1 // pred_fallthru
      _
    // Predicated region
    $region22: #{tpu_custom_call.1} parent=1 // pred_check
      %p116 = pneg %p15
    $region23: #{tpu_custom_call.1} parent=1 // pred_check_branch
      %118 = sbr.rel (%p116) target = $region25
    $region24: #{tpu_custom_call.1} parent=1 // pred_region
      %v119 = vlaneseq
      %v120 = vand.u32 %v119, 127
      %vm121 = vcmp.lt.s32.totalorder %v120, 32
      %v122 = vld [vmem:[%s0] sm:$0xff]
      %v123 = vsel %vm121, %v122, 0.0
      %v124 = vld [vmem:[#allocation2] sm:$0xff]
      %v125 = vld [vmem:[%s1] sm:$0xff]
      %v126 = vld [vmem:[%s1 + $0x8] sm:$0xff]
      %v127 = vld [vmem:[%s1 + $0x10] sm:$0xff]
      %v128 = vld [vmem:[%s1 + $0x18] sm:$0xff]
      %v129 = vld [vmem:[%s1 + $0x20] sm:$0xff]
      %v130 = vld [vmem:[%s1 + $0x28] sm:$0xff]
      %v131 = vld [vmem:[%s1 + $0x30] sm:$0xff]
      %v132 = vld [vmem:[%s1 + $0x38] sm:$0xff]
      %v133 = vld [vmem:[%s1 + $0x40] sm:$0xff]
      %v134 = vld [vmem:[%s1 + $0x48] sm:$0xff]
      %v135 = vld [vmem:[%s1 + $0x50] sm:$0xff]
      %v136 = vld [vmem:[%s1 + $0x58] sm:$0xff]
      %v137 = vld [vmem:[%s1 + $0x60] sm:$0xff]
      %v138 = vld [vmem:[%s1 + $0x68] sm:$0xff]
      %v139 = vld [vmem:[%s1 + $0x70] sm:$0xff]
      %v140 = vld [vmem:[%s1 + $0x78] sm:$0xff]
      %141 = vmatprep.subr.mxu0 0.0
      %142 = vmatpush1.msra.mxu0 %v140
      %143 = vmatprep.subr.mxu0 0.0
      %144 = vmatpush1.msra.mxu0 %v139
      %145 = vmatprep.subr.mxu0 0.0
      %146 = vmatpush1.msra.mxu0 %v138
      %147 = vmatprep.subr.mxu0 0.0
      %148 = vmatpush1.msra.mxu0 %v137
      %149 = vmatprep.subr.mxu0 0.0
      %150 = vmatpush1.msra.mxu0 %v136
      %151 = vmatprep.subr.mxu0 0.0
      %152 = vmatpush1.msra.mxu0 %v135
      %153 = vmatprep.subr.mxu0 0.0
      %154 = vmatpush1.msra.mxu0 %v134
      %155 = vmatprep.subr.mxu0 0.0
      %156 = vmatpush1.msra.mxu0 %v133
      %157 = vmatprep.subr.mxu0 0.0
      %158 = vmatpush1.msra.mxu0 %v132
      %159 = vmatprep.subr.mxu0 0.0
      %160 = vmatpush1.msra.mxu0 %v131
      %161 = vmatprep.subr.mxu0 0.0
      %162 = vmatpush1.msra.mxu0 %v130
      %163 = vmatprep.subr.mxu0 0.0
      %164 = vmatpush1.msra.mxu0 %v129
      %165 = vmatprep.subr.mxu0 0.0
      %166 = vmatpush1.msra.mxu0 %v128
      %167 = vmatprep.subr.mxu0 0.0
      %168 = vmatpush1.msra.mxu0 %v127
      %169 = vmatprep.subr.mxu0 0.0
      %170 = vmatpush1.msra.mxu0 %v126
      %171 = vmatprep.subr.mxu0 0.0
      %172 = vmatpush1.msra.mxu0 %v125
      %173 = vmatprep.subr.mxu0 0.0
      %174 = vmatpush2.msra.mxu0 0.0
      %175 = vmatprep.subr.mxu0 0.0
      %176 = vmatpush2.msra.mxu0 0.0
      %177 = vmatprep.subr.mxu0 0.0
      %178 = vmatpush2.msra.mxu0 0.0
      %179 = vmatprep.subr.mxu0 0.0
      %180 = vmatpush2.msra.mxu0 0.0
      %181 = vmatprep.subr.mxu0 0.0
      %182 = vmatpush2.msra.mxu0 0.0
      %183 = vmatprep.subr.mxu0 0.0
      %184 = vmatpush2.msra.mxu0 0.0
      %185 = vmatprep.subr.mxu0 0.0
      %186 = vmatpush2.msra.mxu0 0.0
      %187 = vmatprep.subr.mxu0 0.0
      %188 = vmatpush2.msra.mxu0 0.0
      %189 = vmatprep.subr.mxu0 0.0
      %190 = vmatpush2.msra.mxu0 0.0
      %191 = vmatprep.subr.mxu0 0.0
      %192 = vmatpush2.msra.mxu0 0.0
      %193 = vmatprep.subr.mxu0 0.0
      %194 = vmatpush2.msra.mxu0 0.0
      %195 = vmatprep.subr.mxu0 0.0
      %196 = vmatpush2.msra.mxu0 0.0
      %197 = vmatprep.subr.mxu0 0.0
      %198 = vmatpush2.msra.mxu0 0.0
      %199 = vmatprep.subr.mxu0 0.0
      %200 = vmatpush2.msra.mxu0 0.0
      %201 = vmatprep.subr.mxu0 0.0
      %202 = vmatpush2.msra.mxu0 0.0
      %203 = vmatprep.subr.mxu0 0.0
      %204 = vmatpush2.msra.mxu0 0.0
      %205 = vmatprep.mubr.f32.mxu0 0.0
      %206 = vmatmul.mubr.f32.gmra.mxu0 %v123
      %v207 = vpop.f32.mrf.mxu0
      %v208 = vadd.f32 0.0, %v207
      %v209 = vpop.f32.mrf.mxu0
      %210 = vdwg.mxu0
      %v211 = vadd.f32 %v124, %v208
      %vm212 = vcmask 31744
      %213 = vst.msk [vmem:[#allocation2] sm:$0xff] %vm212, %v211
      %v214 = vld [vmem:[%s2] sm:$0xf]
      %v215 = vmul.f32 %v214, 2.0
      %v216 = vld [vmem:[#allocation2] sm:$0xff]
      %v218 = vsel %vm212, %v216, 0
      %vm220 = vcmask 1043456
      %v222 = vsel %vm220, %v215, 0
      %224 = vmatprep.subr.mxu0 0.0
      %225 = vmatpush1.msra.mxu0 0.0
      %226 = vmatprep.subr.mxu0 0.0
      %227 = vmatpush1.msra.mxu0 0.0
      %228 = vmatprep.subr.mxu0 0.0
      %229 = vmatpush1.msra.mxu0 0.0
      %230 = vmatprep.subr.mxu0 0.0
      %231 = vmatpush1.msra.mxu0 0.0
      %232 = vmatprep.subr.mxu0 0.0
      %233 = vmatpush1.msra.mxu0 0.0
      %234 = vmatprep.subr.mxu0 0.0
      %235 = vmatpush1.msra.mxu0 0.0
      %236 = vmatprep.subr.mxu0 0.0
      %237 = vmatpush1.msra.mxu0 0.0
      %238 = vmatprep.subr.mxu0 0.0
      %239 = vmatpush1.msra.mxu0 0.0
      %240 = vmatprep.subr.mxu0 0.0
      %241 = vmatpush1.msra.mxu0 0.0
      %242 = vmatprep.subr.mxu0 0.0
      %243 = vmatpush1.msra.mxu0 0.0
      %244 = vmatprep.subr.mxu0 0.0
      %245 = vmatpush1.msra.mxu0 0.0
      %246 = vmatprep.subr.mxu0 0.0
      %247 = vmatpush1.msra.mxu0 0.0
      %248 = vmatprep.subr.mxu0 0.0
      %249 = vmatpush1.msra.mxu0 0.0
      %250 = vmatprep.subr.mxu0 0.0
      %251 = vmatpush1.msra.mxu0 0.0
      %252 = vmatprep.subr.mxu0 0.0
      %253 = vmatpush1.msra.mxu0 0.0
      %254 = vmatprep.subr.mxu0 0.0
      %255 = vmatpush1.msra.mxu0 %v222
      %256 = vmatprep.subr.mxu0 0.0
      %257 = vmatpush2.msra.mxu0 0.0
      %258 = vmatprep.subr.mxu0 0.0
      %259 = vmatpush2.msra.mxu0 0.0
      %260 = vmatprep.subr.mxu0 0.0
      %261 = vmatpush2.msra.mxu0 0.0
      %262 = vmatprep.subr.mxu0 0.0
      %263 = vmatpush2.msra.mxu0 0.0
      %264 = vmatprep.subr.mxu0 0.0
      %265 = vmatpush2.msra.mxu0 0.0
      %266 = vmatprep.subr.mxu0 0.0
      %267 = vmatpush2.msra.mxu0 0.0
      %268 = vmatprep.subr.mxu0 0.0
      %269 = vmatpush2.msra.mxu0 0.0
      %270 = vmatprep.subr.mxu0 0.0
      %271 = vmatpush2.msra.mxu0 0.0
      %272 = vmatprep.subr.mxu0 0.0
      %273 = vmatpush2.msra.mxu0 0.0
      %274 = vmatprep.subr.mxu0 0.0
      %275 = vmatpush2.msra.mxu0 0.0
      %276 = vmatprep.subr.mxu0 0.0
      %277 = vmatpush2.msra.mxu0 0.0
      %278 = vmatprep.subr.mxu0 0.0
      %279 = vmatpush2.msra.mxu0 0.0
      %280 = vmatprep.subr.mxu0 0.0
      %281 = vmatpush2.msra.mxu0 0.0
      %282 = vmatprep.subr.mxu0 0.0
      %283 = vmatpush2.msra.mxu0 0.0
      %284 = vmatprep.subr.mxu0 0.0
      %285 = vmatpush2.msra.mxu0 0.0
      %286 = vmatprep.subr.mxu0 0.0
      %287 = vmatpush2.msra.mxu0 0.0
      %288 = vmatprep.mubr.f32.mxu0 0.0
      %289 = vmatmul.mubr.f32.gmra.mxu0 %v218
      %v290 = vpop.f32.mrf.mxu0
      %v291 = vadd.f32 0.0, %v290
      %v292 = vpop.f32.mrf.mxu0
      %293 = vdwg.mxu0
      %294 = vst [vmem:[#allocation3] sm:$0xff] %v291
    $region25: #{tpu_custom_call.1} parent=1 // pred_fallthru
      _
    // Predicated region
    $region26: #{tpu_custom_call.1} parent=1 // pred_check
      _
    $region27: #{tpu_custom_call.1} parent=1 // pred_check_branch
      %296 = sbr.rel (0) target = $region29
    $region28: #{tpu_custom_call.1} parent=1 // pred_region
      %s298 = ssub.s32 128, 128
      %299 = vsyncadd [#allocation4], %s298
      %s301 = sshll.u32 [#allocation3], 4
      %s302 = int_to_ptr.vmem [resolvable:$true] %s301
      %304 = dma.vmem_to_hbm [thread:$0]  %s302, 128, %s3, [#allocation4]
    $region29: #{tpu_custom_call.1} parent=1 // pred_fallthru
      _
    // Predicated region
    $region30: #{tpu_custom_call.1} parent=1 // pred_check
      _
    $region31: #{tpu_custom_call.1} parent=1 // pred_check_branch
      %306 = sbr.rel (0) target = $region33
    $region32: #{tpu_custom_call.1} parent=1 // pred_region
      %307 = dma.done [#allocation4], 128
    $region33: #{tpu_custom_call.1} parent=1 // pred_fallthru
      _
    %308 = vsyncpa [#allocation4], 1

</llo_original>
